<compile_context>
chip_gen: v7x
topology: tpu7x:2x2x1
jax: 0.10.0
libtpu: 0.0.40
codegen_flags: <defaults>
</compile_context>

<pallas_src>
import functools

import jax
import jax.numpy as jnp
from jax.experimental import pallas as pl
from jax.experimental.pallas import tpu as pltpu


_SCALE = 0.3452390219632011
_MIN_WITH = 0.760402547351158    # element-wise min  -> upper clamp
_MAX_WITH = -0.42610920540287    # element-wise max  -> lower clamp

_VMEM_LIMIT_BYTES = 32 << 20     # fits v7x (64 MiB physical) and raises v5e's 16 MiB default


# --------------------------------------------------------------------------
# Fast path: one fused kernel; a block holds complete rows (full H*W width).
# --------------------------------------------------------------------------
def _fused_kernel(x_ref, o_ref, *, true_hw):
    x = x_ref[...].astype(jnp.float32)                       # (row_block, hw)
    row_sum = jnp.sum(x, axis=-1, keepdims=True)             # (row_block, 1)
    inv = pl.reciprocal(row_sum, approx=False)               # EUP slot
    s = (jnp.float32(_SCALE) * jnp.float32(true_hw)) * inv   # scale/mean(x)
    v = jnp.minimum(x * s, jnp.float32(_MIN_WITH))
    v = jnp.maximum(v, jnp.float32(_MAX_WITH))
    o_ref[...] = v.astype(o_ref.dtype)


# --------------------------------------------------------------------------
# Fallback path for very large H*W (single 8-row block would not fit VMEM):
# kernel A reduces row sums over an "arbitrary" H*W grid axis (accumulating
# in the resident output block), kernel B applies scale + clamp.
# --------------------------------------------------------------------------
def _rowsum_kernel(x_ref, sum_ref, *, hw, hw_block):
    j = pl.program_id(1)

    @pl.when(j == 0)
    def _():
        sum_ref[...] = jnp.zeros_like(sum_ref)

    x = x_ref[...].astype(jnp.float32)                       # (row_block, hw_block)
    # Mask lanes past the true H*W extent (tail block reads are undefined).
    col = jax.lax.broadcasted_iota(jnp.int32, x.shape, 1) + j * hw_block
    x = jnp.where(col < hw, x, 0.0)
    sum_ref[...] += jnp.sum(x, axis=-1, keepdims=True)


def _scale_clamp_kernel(x_ref, sum_ref, o_ref, *, true_hw):
    x = x_ref[...].astype(jnp.float32)
    inv = pl.reciprocal(sum_ref[...], approx=False)
    s = (jnp.float32(_SCALE) * jnp.float32(true_hw)) * inv
    v = jnp.minimum(x * s, jnp.float32(_MIN_WITH))
    v = jnp.maximum(v, jnp.float32(_MAX_WITH))
    o_ref[...] = v.astype(o_ref.dtype)


# --------------------------------------------------------------------------
# Wrapper
# --------------------------------------------------------------------------
def model_forward(x, *, target_block_bytes=4 << 20, vmem_budget_bytes=24 << 20):
    """x: (N, C, H, W) -> same shape; per-(N,C) spatial normalization + clamp."""
    N, C, H, W = x.shape
    rows, hw = N * C, H * W
    x2d = x.reshape(rows, hw)                 # free: contiguous view
    itemsize = x2d.dtype.itemsize
    bytes_per_row = hw * itemsize

    # Footprint of the smallest legal fused block (8 rows), double-buffered
    # for input + output (4 tiles total).
    min_fused_footprint = 4 * 8 * bytes_per_row

    if min_fused_footprint <= vmem_budget_bytes:
        # ---------------- fast fused path ----------------
        rb = max(8, (target_block_bytes // bytes_per_row) // 8 * 8)
        # At least ~4 grid blocks when rows allow (v7x 2-TC sharding + pipelining).
        split_cap = max(8, ((-(-rows // 4)) + 7) // 8 * 8)
        budget_cap = max(8, (vmem_budget_bytes // (4 * bytes_per_row)) // 8 * 8)
        row_block = min(rb, split_cap, budget_cap)

        grid = (pl.cdiv(rows, row_block),)
        out2d = pl.pallas_call(
            functools.partial(_fused_kernel, true_hw=hw),
            out_shape=jax.ShapeDtypeStruct((rows, hw), x.dtype),
            grid_spec=pl.GridSpec(
                grid=grid,
                in_specs=[pl.BlockSpec((row_block, hw), lambda i: (i, 0))],
                out_specs=pl.BlockSpec((row_block, hw), lambda i: (i, 0)),
            ),
            compiler_params=pltpu.CompilerParams(
                dimension_semantics=("parallel",),
                vmem_limit_bytes=_VMEM_LIMIT_BYTES,
            ),
            cost_estimate=pl.CostEstimate(
                flops=5 * rows * hw,
                transcendentals=rows,
                bytes_accessed=2 * rows * hw * itemsize,
            ),
        )(x2d)
        return out2d.reshape(N, C, H, W)

    # ---------------- large-H*W fallback: two kernels ----------------
    row_block = 8
    cap_t = (target_block_bytes // (row_block * itemsize)) // 128 * 128
    cap_b = (vmem_budget_bytes // (4 * row_block * itemsize)) // 128 * 128
    hw_block_cap = max(128, min(cap_t, cap_b))
    hw_block = hw if hw <= hw_block_cap else hw_block_cap
    n_row = pl.cdiv(rows, row_block)
    n_hw = pl.cdiv(hw, hw_block)

    sums = pl.pallas_call(
        functools.partial(_rowsum_kernel, hw=hw, hw_block=hw_block),
        out_shape=jax.ShapeDtypeStruct((rows, 1), jnp.float32),
        grid_spec=pl.GridSpec(
            grid=(n_row, n_hw),
            in_specs=[pl.BlockSpec((row_block, hw_block), lambda i, j: (i, j))],
            out_specs=pl.BlockSpec((row_block, 1), lambda i, j: (i, 0)),
        ),
        compiler_params=pltpu.CompilerParams(
            dimension_semantics=("parallel", "arbitrary"),
            vmem_limit_bytes=_VMEM_LIMIT_BYTES,
        ),
        cost_estimate=pl.CostEstimate(
            flops=rows * hw,
            transcendentals=0,
            bytes_accessed=rows * hw * itemsize + rows * 4,
        ),
    )(x2d)

    out2d = pl.pallas_call(
        functools.partial(_scale_clamp_kernel, true_hw=hw),
        out_shape=jax.ShapeDtypeStruct((rows, hw), x.dtype),
        grid_spec=pl.GridSpec(
            grid=(n_row, n_hw),
            in_specs=[
                pl.BlockSpec((row_block, hw_block), lambda i, j: (i, j)),
                pl.BlockSpec((row_block, 1), lambda i, j: (i, 0)),
            ],
            out_specs=pl.BlockSpec((row_block, hw_block), lambda i, j: (i, j)),
        ),
        compiler_params=pltpu.CompilerParams(
            dimension_semantics=("parallel", "parallel"),
            vmem_limit_bytes=_VMEM_LIMIT_BYTES,
        ),
        cost_estimate=pl.CostEstimate(
            flops=4 * rows * hw,
            transcendentals=rows,
            bytes_accessed=2 * rows * hw * itemsize + rows * 4,
        ),
    )(x2d, sums)
    return out2d.reshape(N, C, H, W)


# --------------------------------------------------------------------------
# Pure-JAX reference (mirrors the intended PyTorch semantics)
# --------------------------------------------------------------------------
def _reference(x):
    v1 = x + x
    v2 = jnp.mean(v1, axis=(-2, -1), keepdims=True)
    v3 = v1 / v2
    v4 = v3 * _SCALE
    v5 = jnp.minimum(v4, _MIN_WITH)
    v6 = jnp.maximum(v5, _MAX_WITH)
    return v6


if __name__ == "__main__":
    key = jax.random.PRNGKey(0)
    # Shape matching the original module's input x1 = torch.randn(1, 3, 48, 48).
    x = jax.random.normal(key, (1, 3, 48, 48), dtype=jnp.float32)
    ref = _reference(x)

    # 1) Fast fused path (the one real workloads hit).
    out = jax.block_until_ready(model_forward(x))
    assert out.shape == x.shape
    assert jnp.allclose(out, ref, atol=1e-5, rtol=1e-5), "fused path mismatch"

    # 2) Force the large-H*W fallback path (tiny budgets) to validate it too,
    #    including the partial tail H*W block (2304 % 512 != 0) and tail rows.
    out2 = jax.block_until_ready(
        model_forward(x, target_block_bytes=8 * 512 * 4,
                      vmem_budget_bytes=4 * 8 * 512 * 4)
    )
    assert jnp.allclose(out2, ref, atol=1e-5, rtol=1e-5), "split path mismatch"

    print("KERNEL_OK")
</pallas_src>

<mosaic_0001>
module attributes {stable_mosaic.version = 11 : i64} {
  func.func @_fused_kernel(%arg0: i32, %arg1: memref<8x2304xf32, #tpu.memory_space<vmem>>, %arg2: memref<8x2304xf32, #tpu.memory_space<vmem>>) attributes {dimension_semantics = [#tpu.dimension_semantics<parallel>], iteration_bounds = array<i64: 1>, scalar_prefetch = 0 : i64, scratch_operands = 0 : i64, tpu.core_type = #tpu.core_type<tc>, window_params = [{transform_indices = @transform_0, window_bounds = array<i64: 8, 2304>}, {transform_indices = @transform_1, window_bounds = array<i64: 8, 2304>}]} {
    %c0 = arith.constant 0 : index
    %c0_0 = arith.constant 0 : index
    %0 = vector.load %arg1[%c0, %c0_0] : memref<8x2304xf32, #tpu.memory_space<vmem>>, vector<8x2304xf32>
    %cst = arith.constant dense<0.000000e+00> : vector<8xf32>
    %1 = vector.multi_reduction <add>, %0, %cst [1] : vector<8x2304xf32> to vector<8xf32>
    %2 = vector.shape_cast %1 : vector<8xf32> to vector<8x1xf32>
    %3 = tpu.reciprocal %2 : vector<8x1xf32> -> vector<8x1xf32>
    %cst_1 = arith.constant 3.452390e-01 : f32
    %cst_2 = arith.constant 2.304000e+03 : f32
    %4 = arith.mulf %cst_1, %cst_2 : f32
    %5 = vector.broadcast %4 : f32 to vector<8x1xf32>
    %6 = arith.mulf %5, %3 : vector<8x1xf32>
    %7 = vector.broadcast %6 : vector<8x1xf32> to vector<8x2304xf32>
    %8 = arith.mulf %0, %7 : vector<8x2304xf32>
    %cst_3 = arith.constant 0.76040256 : f32
    %9 = vector.broadcast %cst_3 : f32 to vector<8x2304xf32>
    %10 = arith.minimumf %8, %9 : vector<8x2304xf32>
    %cst_4 = arith.constant -0.426109195 : f32
    %11 = vector.broadcast %cst_4 : f32 to vector<8x2304xf32>
    %12 = arith.maximumf %10, %11 : vector<8x2304xf32>
    %c0_5 = arith.constant 0 : index
    %c0_6 = arith.constant 0 : index
    %13 = vector.load %arg2[%c0_5, %c0_6] : memref<8x2304xf32, #tpu.memory_space<vmem>>, vector<8x2304xf32>
    tpu.vector_store %arg2[%c0_5, %c0_6], %12 {strides = array<i32>} : memref<8x2304xf32, #tpu.memory_space<vmem>>, vector<8x2304xf32>,
    return
  }
  func.func @transform_0(%arg0: i32) -> (i32, i32) {
    %c0_i32 = arith.constant 0 : i32
    %c0_i32_0 = arith.constant 0 : i32
    return %arg0, %c0_i32 : i32, i32
  }
  func.func @transform_1(%arg0: i32) -> (i32, i32) {
    %c0_i32 = arith.constant 0 : i32
    %c0_i32_0 = arith.constant 0 : i32
    return %arg0, %c0_i32 : i32, i32
  }
}

</mosaic_0001>

<llo_original>
// kernel: tpu_custom_call.1
$region0: #{tpu_custom_call.1}
  #allocation0 [shape = 'u32[]', space=smem, size = 0x4, offset = 0x4, fixed_abs, tag = 'smem constant byte address 0x4 - core index']
  #allocation1 [shape = 'u32[144,128]{1,0:T(1,128)}', space=vmem, size = 0x12000, scoped, tag = 'internal scratch']
  %s0 = inlined_call_operand.hbm [shape: f32[3,2304], index: 0, kind: input, shape index: {}]
  %s1 = inlined_call_operand.hbm [shape: f32[3,2304], index: 1, kind: output, shape index: {}]
  %s2 = sld [smem:[#allocation0]]
  $region18: #{tpu_custom_call.1} parent=0
    _
  %s4 = ssub.s32 1, %s2
  %s5 = scalar_select 0, %s4, %s2
  $region1: #{tpu_custom_call.1} parent=0
    #allocation2 [shape = 'u8[73728]{0}', space=vmem, size = 0x12000, scoped, tag = 'input window, operand 0, single buffered']
    #allocation3 [shape = 's32[1]{0}', space=sflag, size = 0x4, scoped, tag = 'scoped memory for tpu_custom_call.1']
    #allocation4 [shape = 's32[1]{0}', space=sflag, size = 0x4, scoped, tag = 'scoped memory for tpu_custom_call.1']
    #allocation5 [shape = 'u8[73728]{0}', space=vmem, size = 0x12000, scoped, tag = 'output window, operand 0, single buffered']
    %6 = vsyncpa [#allocation3], 0
    %7 = vsyncpa [#allocation4], 0
    // Predicated region
    $region2: #{tpu_custom_call.1} parent=1 // pred_check
      _
    $region3: #{tpu_custom_call.1} parent=1 // pred_check_branch
      %9 = sbr.rel (0) target = $region5
    $region4: #{tpu_custom_call.1} parent=1 // pred_region
      %s11 = ssub.s32 2304, 1152
      %12 = vsyncadd [#allocation3], %s11
      %s13 = sshll.u32 [#allocation2], 4
      %s14 = int_to_ptr.vmem [resolvable:$true] %s13
      %19 = dma.hbm_to_vmem [thread:$0]  %s0, 1152, %s14, [#allocation3], 1152, 1152, 72
    $region5: #{tpu_custom_call.1} parent=1 // pred_fallthru
      _
    // Predicated region
    $region6: #{tpu_custom_call.1} parent=1 // pred_check
      _
    $region7: #{tpu_custom_call.1} parent=1 // pred_check_branch
      %21 = sbr.rel (0) target = $region9
    $region8: #{tpu_custom_call.1} parent=1 // pred_region
      %22 = dma.done [#allocation3], 2304
    $region9: #{tpu_custom_call.1} parent=1 // pred_fallthru
      _
    %v23 = vld [vmem:[#allocation2] sm:$0xff]
    %v24 = vld [vmem:[#allocation2 + $0x8] sm:$0xff]
    %v25 = vld [vmem:[#allocation2 + $0x10] sm:$0xff]
    %v26 = vld [vmem:[#allocation2 + $0x18] sm:$0xff]
    %v27 = vld [vmem:[#allocation2 + $0x20] sm:$0xff]
    %v28 = vld [vmem:[#allocation2 + $0x28] sm:$0xff]
    %v29 = vld [vmem:[#allocation2 + $0x30] sm:$0xff]
    %v30 = vld [vmem:[#allocation2 + $0x38] sm:$0xff]
    %v31 = vld [vmem:[#allocation2 + $0x40] sm:$0xff]
    %v32 = vld [vmem:[#allocation2 + $0x48] sm:$0xff]
    %v33 = vld [vmem:[#allocation2 + $0x50] sm:$0xff]
    %v34 = vld [vmem:[#allocation2 + $0x58] sm:$0xff]
    %v35 = vld [vmem:[#allocation2 + $0x60] sm:$0xff]
    %v36 = vld [vmem:[#allocation2 + $0x68] sm:$0xff]
    %v37 = vld [vmem:[#allocation2 + $0x70] sm:$0xff]
    %v38 = vld [vmem:[#allocation2 + $0x78] sm:$0xff]
    %v39 = vld [vmem:[#allocation2 + $0x80] sm:$0xff]
    %v40 = vld [vmem:[#allocation2 + $0x88] sm:$0xff]
    %v59 = vcombine.low %v23, %v32
    %v60 = vcombine.high %v23, %v32
    %v61 = vcombine.low %v24, %v33
    %v62 = vcombine.high %v24, %v33
    %v63 = vcombine.low %v25, %v34
    %v64 = vcombine.high %v25, %v34
    %v65 = vcombine.low %v26, %v35
    %v66 = vcombine.high %v26, %v35
    %v67 = vcombine.low %v27, %v36
    %v68 = vcombine.high %v27, %v36
    %v69 = vcombine.low %v28, %v37
    %v70 = vcombine.high %v28, %v37
    %v71 = vcombine.low %v29, %v38
    %v72 = vcombine.high %v29, %v38
    %v73 = vcombine.low %v30, %v39
    %v74 = vcombine.high %v30, %v39
    %v75 = vcombine.low %v31, %v40
    %v76 = vcombine.high %v31, %v40
    %v95 = vadd.f32 %v59, %v60
    %v96 = vadd.f32 %v95, %v61
    %v97 = vadd.f32 %v96, %v62
    %v98 = vadd.f32 %v97, %v63
    %v99 = vadd.f32 %v98, %v64
    %v100 = vadd.f32 %v99, %v65
    %v101 = vadd.f32 %v100, %v66
    %v102 = vadd.f32 %v101, %v67
    %v103 = vadd.f32 %v102, %v68
    %v104 = vadd.f32 %v103, %v69
    %v105 = vadd.f32 %v104, %v70
    %v106 = vadd.f32 %v105, %v71
    %v107 = vadd.f32 %v106, %v72
    %v108 = vadd.f32 %v107, %v73
    %v109 = vadd.f32 %v108, %v74
    %v110 = vadd.f32 %v109, %v75
    %v111 = vadd.f32 %v110, %v76
    %112 = vadd.xlane.f32.xlu0 %v111
    %v113 = vpop.xlane.xlu0 %112
    %v114 = vrcp.pop %v113
    %v115 = vmul.f32 %v114, 795.43066
    %v118 = vunpack.c.l.s4 839922192
    %v119 = vunpack.c.0.s8 %v118
    %v120 = vlaneseq
    %v121 = vshrl.u32 %v120, 7
    %v122 = vsub.s32 %v119, %v121
    %v123 = vrot.slane %v115, %v122
    %v125 = vunpack.c.l.s4 1985246804
    %v126 = vunpack.c.0.s8 %v125
    %v127 = vlaneseq
    %v128 = vshrl.u32 %v127, 7
    %v129 = vsub.s32 %v126, %v128
    %v130 = vrot.slane %v115, %v129
    %v133 = vmul.f32 %v23, %v123
    %v134 = vmul.f32 %v24, %v123
    %v135 = vmul.f32 %v25, %v123
    %v136 = vmul.f32 %v26, %v123
    %v137 = vmul.f32 %v27, %v123
    %v138 = vmul.f32 %v28, %v123
    %v139 = vmul.f32 %v29, %v123
    %v140 = vmul.f32 %v30, %v123
    %v141 = vmul.f32 %v31, %v123
    %v142 = vmul.f32 %v32, %v130
    %v143 = vmul.f32 %v33, %v130
    %v144 = vmul.f32 %v34, %v130
    %v145 = vmul.f32 %v35, %v130
    %v146 = vmul.f32 %v36, %v130
    %v147 = vmul.f32 %v37, %v130
    %v148 = vmul.f32 %v38, %v130
    %v149 = vmul.f32 %v39, %v130
    %v150 = vmul.f32 %v40, %v130
    %v151 = vmin.f32 %v133, 0.76040256
    %v152 = vmin.f32 %v134, 0.76040256
    %v153 = vmin.f32 %v135, 0.76040256
    %v154 = vmin.f32 %v136, 0.76040256
    %v155 = vmin.f32 %v137, 0.76040256
    %v156 = vmin.f32 %v138, 0.76040256
    %v157 = vmin.f32 %v139, 0.76040256
    %v158 = vmin.f32 %v140, 0.76040256
    %v159 = vmin.f32 %v141, 0.76040256
    %v160 = vmin.f32 %v142, 0.76040256
    %v161 = vmin.f32 %v143, 0.76040256
    %v162 = vmin.f32 %v144, 0.76040256
    %v163 = vmin.f32 %v145, 0.76040256
    %v164 = vmin.f32 %v146, 0.76040256
    %v165 = vmin.f32 %v147, 0.76040256
    %v166 = vmin.f32 %v148, 0.76040256
    %v167 = vmin.f32 %v149, 0.76040256
    %v168 = vmin.f32 %v150, 0.76040256
    %v169 = vmax.f32 %v151, -0.4261092
    %v170 = vmax.f32 %v152, -0.4261092
    %v171 = vmax.f32 %v153, -0.4261092
    %v172 = vmax.f32 %v154, -0.4261092
    %v173 = vmax.f32 %v155, -0.4261092
    %v174 = vmax.f32 %v156, -0.4261092
    %v175 = vmax.f32 %v157, -0.4261092
    %v176 = vmax.f32 %v158, -0.4261092
    %v177 = vmax.f32 %v159, -0.4261092
    %v178 = vmax.f32 %v160, -0.4261092
    %v179 = vmax.f32 %v161, -0.4261092
    %v180 = vmax.f32 %v162, -0.4261092
    %v181 = vmax.f32 %v163, -0.4261092
    %v182 = vmax.f32 %v164, -0.4261092
    %v183 = vmax.f32 %v165, -0.4261092
    %v184 = vmax.f32 %v166, -0.4261092
    %v185 = vmax.f32 %v167, -0.4261092
    %v186 = vmax.f32 %v168, -0.4261092
    %187 = vst [vmem:[#allocation5] sm:$0xff] %v169
    %188 = vst [vmem:[#allocation5 + $0x8] sm:$0xff] %v170
    %189 = vst [vmem:[#allocation5 + $0x10] sm:$0xff] %v171
    %190 = vst [vmem:[#allocation5 + $0x18] sm:$0xff] %v172
    %191 = vst [vmem:[#allocation5 + $0x20] sm:$0xff] %v173
    %192 = vst [vmem:[#allocation5 + $0x28] sm:$0xff] %v174
    %193 = vst [vmem:[#allocation5 + $0x30] sm:$0xff] %v175
    %194 = vst [vmem:[#allocation5 + $0x38] sm:$0xff] %v176
    %195 = vst [vmem:[#allocation5 + $0x40] sm:$0xff] %v177
    %196 = vst [vmem:[#allocation5 + $0x48] sm:$0xff] %v178
    %197 = vst [vmem:[#allocation5 + $0x50] sm:$0xff] %v179
    %198 = vst [vmem:[#allocation5 + $0x58] sm:$0xff] %v180
    %199 = vst [vmem:[#allocation5 + $0x60] sm:$0xff] %v181
    %200 = vst [vmem:[#allocation5 + $0x68] sm:$0xff] %v182
    %201 = vst [vmem:[#allocation5 + $0x70] sm:$0xff] %v183
    %202 = vst [vmem:[#allocation5 + $0x78] sm:$0xff] %v184
    %203 = vst [vmem:[#allocation5 + $0x80] sm:$0xff] %v185
    %204 = vst [vmem:[#allocation5 + $0x88] sm:$0xff] %v186
    // Predicated region
    $region10: #{tpu_custom_call.1} parent=1 // pred_check
      _
    $region11: #{tpu_custom_call.1} parent=1 // pred_check_branch
      %206 = sbr.rel (0) target = $region13
    $region12: #{tpu_custom_call.1} parent=1 // pred_region
      %s208 = ssub.s32 2304, 1152
      %209 = vsyncadd [#allocation4], %s208
      %s210 = sshll.u32 [#allocation5], 4
      %s211 = int_to_ptr.vmem [resolvable:$true] %s210
      %216 = dma.vmem_to_hbm [thread:$0]  %s211, 1152, %s1, [#allocation4], 1152, 1152, 72
    $region13: #{tpu_custom_call.1} parent=1 // pred_fallthru
      _
    // Predicated region
    $region14: #{tpu_custom_call.1} parent=1 // pred_check
      _
    $region15: #{tpu_custom_call.1} parent=1 // pred_check_branch
      %218 = sbr.rel (0) target = $region17
    $region16: #{tpu_custom_call.1} parent=1 // pred_region
      %219 = dma.done [#allocation4], 2304
    $region17: #{tpu_custom_call.1} parent=1 // pred_fallthru
      _
    %220 = vsyncpa [#allocation3], 1
    %221 = vsyncpa [#allocation4], 1

</llo_original>
